<compile_context>
chip_gen: v7x
topology: tpu7x:2x2x1
jax: 0.10.0
libtpu: 0.0.40
codegen_flags: <defaults>
</compile_context>

<pallas_src>
import functools
import math

import jax
import jax.numpy as jnp
from jax.experimental import pallas as pl
from jax.experimental.pallas import tpu as pltpu


def _round_up(x, m):
    return (x + m - 1) // m * m


def _default_config():
    """Pick tile sizes / vmem budget by TPU generation (VMEM capacity)."""
    try:
        info = pltpu.get_tpu_info()
        vmem_bytes = int(getattr(info, "vmem_capacity_bytes", 64 * 1024 * 1024))
    except Exception:  # pragma: no cover - conservative fallback
        vmem_bytes = 64 * 1024 * 1024
    if vmem_bytes >= 96 * 1024 * 1024:
        # v5e / v6e: 128 MiB physical VMEM -> larger tiles, fewer weight re-reads.
        return dict(tm=512, tn=512, tk=1024, vmem_limit=64 * 1024 * 1024)
    # v7x: 64 MiB physical VMEM per TC -> keep the smaller budget, rely on 2 TCs.
    return dict(tm=256, tn=256, tk=512, vmem_limit=32 * 1024 * 1024)


# ------------------------------ Pallas kernel --------------------------------
def _dora_kernel(x_ref, wvt_ref, xa_ref, lbt_ref, scale_ref, b_ref, o_ref, acc_ref):
    # x_ref    : (tm, tk)    input tile                     (compute dtype, e.g. bf16)
    # wvt_ref  : (tk, tn)    weight_v.T tile                (compute dtype)
    # xa_ref   : (tm, R)     precomputed x @ lora_A.T tile  (compute dtype)
    # lbt_ref  : (R, tn)     scaling * lora_B.T tile        (compute dtype)
    # scale_ref: (1, tn)     weight_m / ||new_v||  row      (f32, precomputed)
    # b_ref    : (1, tn)     bias row                       (f32)
    # o_ref    : (tm, tn)    output tile
    # acc_ref  : (tm, tn)    f32 accumulator scratch
    k = pl.program_id(2)

    @pl.when(k == 0)
    def _():
        acc_ref[...] = jnp.zeros_like(acc_ref)

    # Main GEMM: bf16 (or f32) operands, f32 accumulation on the MXU.
    acc_ref[...] += jnp.dot(x_ref[...], wvt_ref[...], preferred_element_type=jnp.float32)

    @pl.when(k == pl.num_programs(2) - 1)
    def _():
        # Tiny (tm, R) x (R, tn) LoRA dot, done once per output tile.
        y_lora = jnp.dot(xa_ref[...], lbt_ref[...], preferred_element_type=jnp.float32)
        o_ref[...] = ((acc_ref[...] + y_lora) * scale_ref[...] + b_ref[...]).astype(o_ref.dtype)


# -------------------------------- wrapper -------------------------------------
def dora_forward(x, weight_v, lora_A, lora_B, weight_m, bias, *,
                 scaling=1.0, compute_dtype=jnp.bfloat16, out_dtype=jnp.float32,
                 tm=None, tn=None, tk=None):
    """x: (..., in_features) -> (..., out_features)."""
    cfg = _default_config()
    tm = cfg["tm"] if tm is None else tm
    tn = cfg["tn"] if tn is None else tn
    tk = cfg["tk"] if tk is None else tk

    lead = x.shape[:-1]
    M = int(math.prod(lead)) if lead else 1
    K = x.shape[-1]
    N = weight_v.shape[0]
    R = lora_A.shape[0]

    f32 = jnp.float32
    scaling = jnp.asarray(scaling, f32)

    # ---- per-output-column scale, exact f32, no (N, K) delta materialized -------
    wv32 = weight_v.astype(f32)                                   # (N, K)
    la32 = lora_A.astype(f32)                                     # (R, K)
    lbT32 = lora_B.astype(f32).T                                  # (R, N)
    wv_sq = jnp.sum(wv32 * wv32, axis=1)                          # (N,)   ||wv_n||^2
    aw = la32 @ wv32.T                                            # (R, N) A @ wv_n
    cross = jnp.sum(lbT32 * aw, axis=0)                           # (N,)   <wv_n,(BA)_n>
    gram = la32 @ la32.T                                          # (R, R) A @ A.T
    quad = jnp.sum(lbT32 * (gram @ lbT32), axis=0)                # (N,)   ||(BA)_n||^2
    normsq = wv_sq + 2.0 * scaling * cross + scaling * scaling * quad
    scale_row = weight_m.astype(f32).reshape(-1) / jnp.sqrt(normsq)   # (N,)

    # ---- precompute XA = x @ lora_A.T (tiny: M*K*R) so lora_A never enters kernel ----
    x2_f32 = x.reshape(M, K).astype(f32)
    xa = (x2_f32 @ la32.T).astype(compute_dtype)                  # (M, R)

    # ---- lane/sublane-friendly padded sizes; zero padding is exact --------------
    R_pad = _round_up(R, 8)
    tm = min(tm, _round_up(M, 8))
    tn = min(tn, _round_up(N, 128))
    tk = min(tk, _round_up(K, 128))
    M_pad = _round_up(M, tm)
    N_pad = _round_up(N, tn)
    K_pad = _round_up(K, tk)

    def pad2(a, rows, cols):
        return jnp.pad(a, ((0, rows - a.shape[0]), (0, cols - a.shape[1])))

    x2 = pad2(x2_f32.astype(compute_dtype), M_pad, K_pad)                      # (M_pad, K_pad)
    wvt = pad2(weight_v.astype(compute_dtype).T, K_pad, N_pad)                 # (K_pad, N_pad)
    xa_p = pad2(xa, M_pad, R_pad)                                              # (M_pad, R_pad)
    lbt = pad2((scaling * lbT32).astype(compute_dtype), R_pad, N_pad)          # (R_pad, N_pad)
    scale_p = pad2(scale_row.reshape(1, N), 1, N_pad)                          # (1, N_pad)
    if bias is None:
        b_p = jnp.zeros((1, N_pad), f32)
    else:
        b_p = pad2(bias.astype(f32).reshape(1, N), 1, N_pad)                   # (1, N_pad)

    grid = (M_pad // tm, N_pad // tn, K_pad // tk)

    out = pl.pallas_call(
        _dora_kernel,
        out_shape=jax.ShapeDtypeStruct((M_pad, N_pad), out_dtype),
        grid=grid,
        in_specs=[
            pl.BlockSpec((tm, tk), lambda i, j, k: (i, k)),        # x         [M, K]
            pl.BlockSpec((tk, tn), lambda i, j, k: (k, j)),        # weight_v.T[K, N]
            pl.BlockSpec((tm, R_pad), lambda i, j, k: (i, 0)),     # x @ A.T   [M, R]
            pl.BlockSpec((R_pad, tn), lambda i, j, k: (0, j)),     # s * B.T   [R, N]
            pl.BlockSpec((1, tn), lambda i, j, k: (0, j)),         # scale row
            pl.BlockSpec((1, tn), lambda i, j, k: (0, j)),         # bias row
        ],
        out_specs=pl.BlockSpec((tm, tn), lambda i, j, k: (i, j)),
        scratch_shapes=[pltpu.VMEM((tm, tn), jnp.float32)],
        compiler_params=pltpu.CompilerParams(
            # (i, j) tiles are independent -> shard across v7x's 2 TCs; K is a reduction.
            dimension_semantics=("parallel", "parallel", "arbitrary"),
            vmem_limit_bytes=cfg["vmem_limit"],
        ),
    )(x2, wvt, xa_p, lbt, scale_p, b_p)

    return out[:M, :N].reshape(*lead, N)


# -------------------------- pure-JAX reference --------------------------------
def dora_reference(x, weight_v, lora_A, lora_B, weight_m, bias, scaling=1.0):
    new_v = weight_v + (lora_B @ lora_A) * scaling
    norm = jnp.linalg.norm(new_v, axis=1, keepdims=True)
    w = weight_m.reshape(-1, 1) / norm * new_v
    y = x @ w.T
    if bias is not None:
        y = y + bias.reshape(-1)
    return y


# ---------------------------------- main ---------------------------------------
if __name__ == "__main__":
    # ------------ test 1: module-sized shapes, f32 MXU operands, tight check ------
    B, S, IN, OUT, R = 2, 8, 32, 32, 4
    SCALING = 1.0
    k_x, k_w, k_b, k_la, k_lb = jax.random.split(jax.random.PRNGKey(0), 5)

    orig_w = jax.random.normal(k_w, (OUT, IN), jnp.float32) * 0.1
    weight_v = orig_w                                               # weight_norm: v = weight
    weight_m = jnp.linalg.norm(orig_w, axis=1, keepdims=True)       # (OUT, 1) magnitude
    bias = jax.random.normal(k_b, (OUT,), jnp.float32) * 0.05
    bound = 1.0 / math.sqrt(IN)
    lora_A = jax.random.uniform(k_la, (R, IN), jnp.float32, minval=-bound, maxval=bound)
    lora_B = jax.random.normal(k_lb, (OUT, R), jnp.float32) * 0.01  # nonzero LoRA path
    x = jax.random.normal(k_x, (B, S, IN), jnp.float32)

    out = jax.block_until_ready(
        dora_forward(x, weight_v, lora_A, lora_B, weight_m, bias,
                     scaling=SCALING, compute_dtype=jnp.float32))
    ref = dora_reference(x, weight_v, lora_A, lora_B, weight_m, bias, scaling=SCALING)
    assert out.shape == (B, S, OUT), out.shape
    assert jnp.allclose(out, ref, atol=2e-4, rtol=2e-4), float(jnp.max(jnp.abs(out - ref)))

    # --- test 2: non-aligned shapes, default bf16 MXU operands, multi-tile 3x2x3 grid ---
    B2, S2, IN2, OUT2, R2 = 2, 72, 384, 160, 4
    k2 = jax.random.split(jax.random.PRNGKey(1), 5)
    w2 = jax.random.normal(k2[1], (OUT2, IN2), jnp.float32) * 0.1
    wm2 = jnp.linalg.norm(w2, axis=1, keepdims=True)
    b2 = jax.random.normal(k2[2], (OUT2,), jnp.float32) * 0.05
    la2 = jax.random.uniform(k2[3], (R2, IN2), jnp.float32,
                             minval=-1.0 / math.sqrt(IN2), maxval=1.0 / math.sqrt(IN2))
    lb2 = jax.random.normal(k2[4], (OUT2, R2), jnp.float32) * 0.01
    x2 = jax.random.normal(k2[0], (B2, S2, IN2), jnp.float32)

    out2 = jax.block_until_ready(
        dora_forward(x2, w2, la2, lb2, wm2, b2, scaling=0.5,
                     tm=64, tn=128, tk=128))
    ref2 = dora_reference(x2, w2, la2, lb2, wm2, b2, scaling=0.5)
    assert out2.shape == (B2, S2, OUT2), out2.shape
    assert jnp.allclose(out2, ref2, atol=5e-2, rtol=5e-2), float(jnp.max(jnp.abs(out2 - ref2)))

    print("KERNEL_OK")
</pallas_src>

<mosaic_0001>
module attributes {stable_mosaic.version = 11 : i64} {
  func.func @_dora_kernel(%arg0: i32, %arg1: i32, %arg2: i32, %arg3: memref<16x128xf32, #tpu.memory_space<vmem>>, %arg4: memref<128x128xf32, #tpu.memory_space<vmem>>, %arg5: memref<16x8xf32, #tpu.memory_space<vmem>>, %arg6: memref<8x128xf32, #tpu.memory_space<vmem>>, %arg7: memref<1x128xf32, #tpu.memory_space<vmem>>, %arg8: memref<1x128xf32, #tpu.memory_space<vmem>>, %arg9: memref<16x128xf32, #tpu.memory_space<vmem>>, %arg10: memref<16x128xf32, #tpu.memory_space<vmem>>) attributes {dimension_semantics = [#tpu.dimension_semantics<parallel>, #tpu.dimension_semantics<parallel>, #tpu.dimension_semantics<arbitrary>], iteration_bounds = array<i64: 1, 1, 1>, scalar_prefetch = 0 : i64, scratch_operands = 1 : i64, tpu.core_type = #tpu.core_type<tc>, window_params = [{transform_indices = @transform_0, window_bounds = array<i64: 16, 128>}, {transform_indices = @transform_1, window_bounds = array<i64: 128, 128>}, {transform_indices = @transform_2, window_bounds = array<i64: 16, 8>}, {transform_indices = @transform_3, window_bounds = array<i64: 8, 128>}, {transform_indices = @transform_4, window_bounds = array<i64: 1, 128>}, {transform_indices = @transform_5, window_bounds = array<i64: 1, 128>}, {transform_indices = @transform_6, window_bounds = array<i64: 16, 128>}]} {
    %c0_i32 = arith.constant 0 : i32
    %0 = arith.cmpi eq, %arg2, %c0_i32 : i32
    %1 = arith.extui %0 : i1 to i32
    %c0_i32_0 = arith.constant 0 : i32
    %2 = arith.cmpi ne, %1, %c0_i32_0 : i32
    scf.if %2 {
      %cst_10 = arith.constant 0.000000e+00 : f32
      %12 = vector.broadcast %cst_10 : f32 to vector<16x128xf32>
      %c0_11 = arith.constant 0 : index
      %c0_12 = arith.constant 0 : index
      %13 = vector.load %arg10[%c0_11, %c0_12] : memref<16x128xf32, #tpu.memory_space<vmem>>, vector<16x128xf32>
      tpu.vector_store %arg10[%c0_11, %c0_12], %12 {strides = array<i32>} : memref<16x128xf32, #tpu.memory_space<vmem>>, vector<16x128xf32>,
    } else {
    }
    %c0 = arith.constant 0 : index
    %c0_1 = arith.constant 0 : index
    %3 = vector.load %arg10[%c0, %c0_1] : memref<16x128xf32, #tpu.memory_space<vmem>>, vector<16x128xf32>
    %c0_2 = arith.constant 0 : index
    %c0_3 = arith.constant 0 : index
    %4 = vector.load %arg3[%c0_2, %c0_3] : memref<16x128xf32, #tpu.memory_space<vmem>>, vector<16x128xf32>
    %c0_4 = arith.constant 0 : index
    %c0_5 = arith.constant 0 : index
    %5 = vector.load %arg4[%c0_4, %c0_5] : memref<128x128xf32, #tpu.memory_space<vmem>>, vector<128x128xf32>
    %cst = arith.constant dense<0.000000e+00> : vector<16x128xf32>
    %6 = tpu.matmul %4, %5, %cst {dimension_numbers = #tpu.dot_dimension_numbers<[1], [0], [0], [1], [0, 0, 1, 1], [], []>} : vector<16x128xf32>, vector<128x128xf32>, vector<16x128xf32> -> vector<16x128xf32>
    %7 = arith.addf %3, %6 : vector<16x128xf32>
    %c0_6 = arith.constant 0 : index
    %c0_7 = arith.constant 0 : index
    %8 = vector.load %arg10[%c0_6, %c0_7] : memref<16x128xf32, #tpu.memory_space<vmem>>, vector<16x128xf32>
    tpu.vector_store %arg10[%c0_6, %c0_7], %7 {strides = array<i32>} : memref<16x128xf32, #tpu.memory_space<vmem>>, vector<16x128xf32>,
    %c0_i32_8 = arith.constant 0 : i32
    %9 = arith.cmpi eq, %arg2, %c0_i32_8 : i32
    %10 = arith.extui %9 : i1 to i32
    %c0_i32_9 = arith.constant 0 : i32
    %11 = arith.cmpi ne, %10, %c0_i32_9 : i32
    scf.if %11 {
      %c0_10 = arith.constant 0 : index
      %c0_11 = arith.constant 0 : index
      %12 = vector.load %arg5[%c0_10, %c0_11] : memref<16x8xf32, #tpu.memory_space<vmem>>, vector<16x8xf32>
      %c0_12 = arith.constant 0 : index
      %c0_13 = arith.constant 0 : index
      %13 = vector.load %arg6[%c0_12, %c0_13] : memref<8x128xf32, #tpu.memory_space<vmem>>, vector<8x128xf32>
      %cst_14 = arith.constant dense<0.000000e+00> : vector<16x128xf32>
      %14 = tpu.matmul %12, %13, %cst_14 {dimension_numbers = #tpu.dot_dimension_numbers<[1], [0], [0], [1], [0, 0, 1, 1], [], []>} : vector<16x8xf32>, vector<8x128xf32>, vector<16x128xf32> -> vector<16x128xf32>
      %c0_15 = arith.constant 0 : index
      %c0_16 = arith.constant 0 : index
      %15 = vector.load %arg10[%c0_15, %c0_16] : memref<16x128xf32, #tpu.memory_space<vmem>>, vector<16x128xf32>
      %16 = arith.addf %15, %14 : vector<16x128xf32>
      %c0_17 = arith.constant 0 : index
      %c0_18 = arith.constant 0 : index
      %17 = vector.load %arg7[%c0_17, %c0_18] : memref<1x128xf32, #tpu.memory_space<vmem>>, vector<1x128xf32>
      %18 = vector.broadcast %17 : vector<1x128xf32> to vector<16x128xf32>
      %19 = arith.mulf %16, %18 : vector<16x128xf32>
      %c0_19 = arith.constant 0 : index
      %c0_20 = arith.constant 0 : index
      %20 = vector.load %arg8[%c0_19, %c0_20] : memref<1x128xf32, #tpu.memory_space<vmem>>, vector<1x128xf32>
      %21 = vector.broadcast %20 : vector<1x128xf32> to vector<16x128xf32>
      %22 = arith.addf %19, %21 : vector<16x128xf32>
      %c0_21 = arith.constant 0 : index
      %c0_22 = arith.constant 0 : index
      %23 = vector.load %arg9[%c0_21, %c0_22] : memref<16x128xf32, #tpu.memory_space<vmem>>, vector<16x128xf32>
      tpu.vector_store %arg9[%c0_21, %c0_22], %22 {strides = array<i32>} : memref<16x128xf32, #tpu.memory_space<vmem>>, vector<16x128xf32>,
    } else {
    }
    return
  }
  func.func @transform_0(%arg0: i32, %arg1: i32, %arg2: i32) -> (i32, i32) {
    %c0_i32 = arith.constant 0 : i32
    return %arg0, %arg2 : i32, i32
  }
  func.func @transform_1(%arg0: i32, %arg1: i32, %arg2: i32) -> (i32, i32) {
    %c0_i32 = arith.constant 0 : i32
    return %arg2, %arg1 : i32, i32
  }
  func.func @transform_2(%arg0: i32, %arg1: i32, %arg2: i32) -> (i32, i32) {
    %c0_i32 = arith.constant 0 : i32
    %c0_i32_0 = arith.constant 0 : i32
    return %arg0, %c0_i32 : i32, i32
  }
  func.func @transform_3(%arg0: i32, %arg1: i32, %arg2: i32) -> (i32, i32) {
    %c0_i32 = arith.constant 0 : i32
    %c0_i32_0 = arith.constant 0 : i32
    return %c0_i32, %arg1 : i32, i32
  }
  func.func @transform_4(%arg0: i32, %arg1: i32, %arg2: i32) -> (i32, i32) {
    %c0_i32 = arith.constant 0 : i32
    %c0_i32_0 = arith.constant 0 : i32
    return %c0_i32, %arg1 : i32, i32
  }
  func.func @transform_5(%arg0: i32, %arg1: i32, %arg2: i32) -> (i32, i32) {
    %c0_i32 = arith.constant 0 : i32
    %c0_i32_0 = arith.constant 0 : i32
    return %c0_i32, %arg1 : i32, i32
  }
  func.func @transform_6(%arg0: i32, %arg1: i32, %arg2: i32) -> (i32, i32) {
    %c0_i32 = arith.constant 0 : i32
    return %arg0, %arg1 : i32, i32
  }
}

</mosaic_0001>

<llo_original>
// kernel: tpu_custom_call.1
$region0: #{tpu_custom_call.1}
  #allocation0 [shape = 'u32[]', space=smem, size = 0x4, offset = 0x4, fixed_abs, tag = 'smem constant byte address 0x4 - core index']
  #allocation1 [shape = 'u32[144,128]{1,0:T(1,128)}', space=vmem, size = 0x12000, scoped, tag = 'internal scratch']
  #allocation2 [shape = 'f32[16,128]{1,0:T(8,128)}', space=vmem, size = 0x2000, scoped, tag = 'scratch operand']
  %s0 = inlined_call_operand.vmem [shape: f32[16,128], index: 0, kind: input, shape index: {}]
  %s1 = inlined_call_operand.hbm [shape: f32[128,128], index: 1, kind: input, shape index: {}]
  %s2 = inlined_call_operand.vmem [shape: f32[16,8], index: 2, kind: input, shape index: {}]
  %s3 = inlined_call_operand.vmem [shape: f32[8,128], index: 3, kind: input, shape index: {}]
  %s4 = inlined_call_operand.vmem [shape: f32[1,128], index: 4, kind: input, shape index: {}]
  %s5 = inlined_call_operand.vmem [shape: f32[1,128], index: 5, kind: input, shape index: {}]
  %s6 = inlined_call_operand.hbm [shape: f32[16,128], index: 6, kind: output, shape index: {}]
  %s7 = sld [smem:[#allocation0]]
  $region46: #{tpu_custom_call.1} parent=0
    _
  %s9 = ssub.s32 1, %s7
  %s10 = scalar_select 0, %s9, %s7
  $region1: #{tpu_custom_call.1} parent=0
    #allocation3 [shape = 'u8[65536]{0}', space=vmem, size = 0x10000, scoped, tag = 'input window, operand 1, single buffered']
    #allocation4 [shape = 's32[1]{0}', space=sflag, size = 0x4, scoped, tag = 'scoped memory for tpu_custom_call.1']
    #allocation5 [shape = 's32[1]{0}', space=sflag, size = 0x4, scoped, tag = 'scoped memory for tpu_custom_call.1']
    #allocation6 [shape = 'u8[8192]{0}', space=vmem, size = 0x2000, scoped, tag = 'output window, operand 0, single buffered']
    %11 = vsyncpa [#allocation4], 0
    %12 = vsyncpa [#allocation5], 0
    // Predicated region
    $region2: #{tpu_custom_call.1} parent=1 // pred_check
      _
    $region3: #{tpu_custom_call.1} parent=1 // pred_check_branch
      %14 = sbr.rel (0) target = $region5
    $region4: #{tpu_custom_call.1} parent=1 // pred_region
      _
    $region5: #{tpu_custom_call.1} parent=1 // pred_fallthru
      _
    // Predicated region
    $region6: #{tpu_custom_call.1} parent=1 // pred_check
      _
    $region7: #{tpu_custom_call.1} parent=1 // pred_check_branch
      %16 = sbr.rel (0) target = $region9
    $region8: #{tpu_custom_call.1} parent=1 // pred_region
      %s18 = ssub.s32 2048, 2048
      %19 = vsyncadd [#allocation4], %s18
      %s20 = sshll.u32 [#allocation3], 4
      %s21 = int_to_ptr.vmem [resolvable:$true] %s20
      %26 = dma.hbm_to_vmem [thread:$0]  %s1, 2048, %s21, [#allocation4], 128, 128, 8
    $region9: #{tpu_custom_call.1} parent=1 // pred_fallthru
      _
    // Predicated region
    $region10: #{tpu_custom_call.1} parent=1 // pred_check
      _
    $region11: #{tpu_custom_call.1} parent=1 // pred_check_branch
      %28 = sbr.rel (0) target = $region13
    $region12: #{tpu_custom_call.1} parent=1 // pred_region
      _
    $region13: #{tpu_custom_call.1} parent=1 // pred_fallthru
      _
    // Predicated region
    $region14: #{tpu_custom_call.1} parent=1 // pred_check
      _
    $region15: #{tpu_custom_call.1} parent=1 // pred_check_branch
      %30 = sbr.rel (0) target = $region17
    $region16: #{tpu_custom_call.1} parent=1 // pred_region
      _
    $region17: #{tpu_custom_call.1} parent=1 // pred_fallthru
      _
    // Predicated region
    $region18: #{tpu_custom_call.1} parent=1 // pred_check
      _
    $region19: #{tpu_custom_call.1} parent=1 // pred_check_branch
      %32 = sbr.rel (0) target = $region21
    $region20: #{tpu_custom_call.1} parent=1 // pred_region
      _
    $region21: #{tpu_custom_call.1} parent=1 // pred_fallthru
      _
    // Predicated region
    $region22: #{tpu_custom_call.1} parent=1 // pred_check
      _
    $region23: #{tpu_custom_call.1} parent=1 // pred_check_branch
      %34 = sbr.rel (0) target = $region25
    $region24: #{tpu_custom_call.1} parent=1 // pred_region
      _
    $region25: #{tpu_custom_call.1} parent=1 // pred_fallthru
      _
    // Predicated region
    $region26: #{tpu_custom_call.1} parent=1 // pred_check
      _
    $region27: #{tpu_custom_call.1} parent=1 // pred_check_branch
      %36 = sbr.rel (0) target = $region29
    $region28: #{tpu_custom_call.1} parent=1 // pred_region
      %37 = dma.done [#allocation4], 2048
    $region29: #{tpu_custom_call.1} parent=1 // pred_fallthru
      _
    %p38 = scmp.eq.s32.totalorder 0, 0
    // Predicated region
    $region30: #{tpu_custom_call.1} parent=1 // pred_check
      %p39 = pneg %p38
    $region31: #{tpu_custom_call.1} parent=1 // pred_check_branch
      %41 = sbr.rel (%p39) target = $region33
    $region32: #{tpu_custom_call.1} parent=1 // pred_region
      %42 = vst [vmem:[#allocation2] sm:$0xff] 0.0
      %43 = vst [vmem:[#allocation2 + $0x8] sm:$0xff] 0.0
    $region33: #{tpu_custom_call.1} parent=1 // pred_fallthru
      _
    %v44 = vld [vmem:[#allocation2] sm:$0xff]
    %v45 = vld [vmem:[#allocation2 + $0x8] sm:$0xff]
    %v46 = vld [vmem:[%s0] sm:$0xff]
    %v47 = vld [vmem:[%s0 + $0x8] sm:$0xff]
    %v48 = vld [vmem:[#allocation3] sm:$0xff]
    %v49 = vld [vmem:[#allocation3 + $0x8] sm:$0xff]
    %v50 = vld [vmem:[#allocation3 + $0x10] sm:$0xff]
    %v51 = vld [vmem:[#allocation3 + $0x18] sm:$0xff]
    %v52 = vld [vmem:[#allocation3 + $0x20] sm:$0xff]
    %v53 = vld [vmem:[#allocation3 + $0x28] sm:$0xff]
    %v54 = vld [vmem:[#allocation3 + $0x30] sm:$0xff]
    %v55 = vld [vmem:[#allocation3 + $0x38] sm:$0xff]
    %v56 = vld [vmem:[#allocation3 + $0x40] sm:$0xff]
    %v57 = vld [vmem:[#allocation3 + $0x48] sm:$0xff]
    %v58 = vld [vmem:[#allocation3 + $0x50] sm:$0xff]
    %v59 = vld [vmem:[#allocation3 + $0x58] sm:$0xff]
    %v60 = vld [vmem:[#allocation3 + $0x60] sm:$0xff]
    %v61 = vld [vmem:[#allocation3 + $0x68] sm:$0xff]
    %v62 = vld [vmem:[#allocation3 + $0x70] sm:$0xff]
    %v63 = vld [vmem:[#allocation3 + $0x78] sm:$0xff]
    %64 = vmatprep.subr.mxu0 0.0
    %65 = vmatpush1.msra.mxu0 %v48
    %66 = vmatprep.subr.mxu0 0.0
    %67 = vmatpush1.msra.mxu0 %v49
    %68 = vmatprep.subr.mxu0 0.0
    %69 = vmatpush1.msra.mxu0 %v50
    %70 = vmatprep.subr.mxu0 0.0
    %71 = vmatpush1.msra.mxu0 %v51
    %72 = vmatprep.subr.mxu0 0.0
    %73 = vmatpush1.msra.mxu0 %v52
    %74 = vmatprep.subr.mxu0 0.0
    %75 = vmatpush1.msra.mxu0 %v53
    %76 = vmatprep.subr.mxu0 0.0
    %77 = vmatpush1.msra.mxu0 %v54
    %78 = vmatprep.subr.mxu0 0.0
    %79 = vmatpush1.msra.mxu0 %v55
    %80 = vmatprep.subr.mxu0 0.0
    %81 = vmatpush1.msra.mxu0 %v56
    %82 = vmatprep.subr.mxu0 0.0
    %83 = vmatpush1.msra.mxu0 %v57
    %84 = vmatprep.subr.mxu0 0.0
    %85 = vmatpush1.msra.mxu0 %v58
    %86 = vmatprep.subr.mxu0 0.0
    %87 = vmatpush1.msra.mxu0 %v59
    %88 = vmatprep.subr.mxu0 0.0
    %89 = vmatpush1.msra.mxu0 %v60
    %90 = vmatprep.subr.mxu0 0.0
    %91 = vmatpush1.msra.mxu0 %v61
    %92 = vmatprep.subr.mxu0 0.0
    %93 = vmatpush1.msra.mxu0 %v62
    %94 = vmatprep.subr.mxu0 0.0
    %95 = vmatpush1.msra.mxu0 %v63
    %96 = vmatprep.subr.mxu0 0.0
    %97 = vmatpush1.msra.mxu0 0.0
    %98 = vmatprep.subr.mxu0 0.0
    %99 = vmatpush1.msra.mxu0 0.0
    %100 = vmatprep.subr.mxu0 0.0
    %101 = vmatpush1.msra.mxu0 0.0
    %102 = vmatprep.subr.mxu0 0.0
    %103 = vmatpush1.msra.mxu0 0.0
    %104 = vmatprep.subr.mxu0 0.0
    %105 = vmatpush1.msra.mxu0 0.0
    %106 = vmatprep.subr.mxu0 0.0
    %107 = vmatpush1.msra.mxu0 0.0
    %108 = vmatprep.subr.mxu0 0.0
    %109 = vmatpush1.msra.mxu0 0.0
    %110 = vmatprep.subr.mxu0 0.0
    %111 = vmatpush1.msra.mxu0 0.0
    %112 = vmatprep.subr.mxu0 0.0
    %113 = vmatpush1.msra.mxu0 0.0
    %114 = vmatprep.subr.mxu0 0.0
    %115 = vmatpush1.msra.mxu0 0.0
    %116 = vmatprep.subr.mxu0 0.0
    %117 = vmatpush1.msra.mxu0 0.0
    %118 = vmatprep.subr.mxu0 0.0
    %119 = vmatpush1.msra.mxu0 0.0
    %120 = vmatprep.subr.mxu0 0.0
    %121 = vmatpush1.msra.mxu0 0.0
    %122 = vmatprep.subr.mxu0 0.0
    %123 = vmatpush1.msra.mxu0 0.0
    %124 = vmatprep.subr.mxu0 0.0
    %125 = vmatpush1.msra.mxu0 0.0
    %126 = vmatprep.subr.mxu0 0.0
    %127 = vmatpush1.msra.mxu0 0.0
    %128 = vmatprep.mubr.f32.mxu0 0.0
    %129 = vmatmul.mubr.f32.gmra.mrb[0].mxu0 %v46
    %v130 = vpop.f32.mrb[0].mxu0
    %v131 = vadd.f32 0.0, %v130
    %v132 = vpop.f32.mrb[0].mxu0
    %133 = vmatprep.mubr.f32.mxu0 0.0
    %134 = vmatmul.mubr.f32.gmra.mrb[0].mxu0 %v47
    %v135 = vpop.f32.mrb[0].mxu0
    %v136 = vadd.f32 0.0, %v135
    %v137 = vpop.f32.mrb[0].mxu0
    %138 = vdwg.mxu0
    %v139 = vadd.f32 %v44, %v131
    %v140 = vadd.f32 %v45, %v136
    %141 = vst [vmem:[#allocation2] sm:$0xff] %v139
    %142 = vst [vmem:[#allocation2 + $0x8] sm:$0xff] %v140
    // Predicated region
    $region34: #{tpu_custom_call.1} parent=1 // pred_check
      %p143 = pneg %p38
    $region35: #{tpu_custom_call.1} parent=1 // pred_check_branch
      %145 = sbr.rel (%p143) target = $region37
    $region36: #{tpu_custom_call.1} parent=1 // pred_region
      %v146 = vld [vmem:[%s2] sm:$0xff]
      %v147 = vld [vmem:[%s2 + $0x8] sm:$0xff]
      %v148 = vld [vmem:[%s3] sm:$0xff]
      %vm149 = vcmask 64512
      %v151 = vsel %vm149, %v146, 0
      %v154 = vsel %vm149, %v147, 0
      %156 = vmatprep.subr.mxu0 0.0
      %157 = vmatpush1.msra.mxu0 %v148
      %158 = vmatprep.subr.mxu0 0.0
      %159 = vmatpush1.msra.mxu0 0.0
      %160 = vmatprep.subr.mxu0 0.0
      %161 = vmatpush1.msra.mxu0 0.0
      %162 = vmatprep.subr.mxu0 0.0
      %163 = vmatpush1.msra.mxu0 0.0
      %164 = vmatprep.subr.mxu0 0.0
      %165 = vmatpush1.msra.mxu0 0.0
      %166 = vmatprep.subr.mxu0 0.0
      %167 = vmatpush1.msra.mxu0 0.0
      %168 = vmatprep.subr.mxu0 0.0
      %169 = vmatpush1.msra.mxu0 0.0
      %170 = vmatprep.subr.mxu0 0.0
      %171 = vmatpush1.msra.mxu0 0.0
      %172 = vmatprep.subr.mxu0 0.0
      %173 = vmatpush1.msra.mxu0 0.0
      %174 = vmatprep.subr.mxu0 0.0
      %175 = vmatpush1.msra.mxu0 0.0
      %176 = vmatprep.subr.mxu0 0.0
      %177 = vmatpush1.msra.mxu0 0.0
      %178 = vmatprep.subr.mxu0 0.0
      %179 = vmatpush1.msra.mxu0 0.0
      %180 = vmatprep.subr.mxu0 0.0
      %181 = vmatpush1.msra.mxu0 0.0
      %182 = vmatprep.subr.mxu0 0.0
      %183 = vmatpush1.msra.mxu0 0.0
      %184 = vmatprep.subr.mxu0 0.0
      %185 = vmatpush1.msra.mxu0 0.0
      %186 = vmatprep.subr.mxu0 0.0
      %187 = vmatpush1.msra.mxu0 0.0
      %188 = vmatprep.subr.mxu0 0.0
      %189 = vmatpush1.msra.mxu0 0.0
      %190 = vmatprep.subr.mxu0 0.0
      %191 = vmatpush1.msra.mxu0 0.0
      %192 = vmatprep.subr.mxu0 0.0
      %193 = vmatpush1.msra.mxu0 0.0
      %194 = vmatprep.subr.mxu0 0.0
      %195 = vmatpush1.msra.mxu0 0.0
      %196 = vmatprep.subr.mxu0 0.0
      %197 = vmatpush1.msra.mxu0 0.0
      %198 = vmatprep.subr.mxu0 0.0
      %199 = vmatpush1.msra.mxu0 0.0
      %200 = vmatprep.subr.mxu0 0.0
      %201 = vmatpush1.msra.mxu0 0.0
      %202 = vmatprep.subr.mxu0 0.0
      %203 = vmatpush1.msra.mxu0 0.0
      %204 = vmatprep.subr.mxu0 0.0
      %205 = vmatpush1.msra.mxu0 0.0
      %206 = vmatprep.subr.mxu0 0.0
      %207 = vmatpush1.msra.mxu0 0.0
      %208 = vmatprep.subr.mxu0 0.0
      %209 = vmatpush1.msra.mxu0 0.0
      %210 = vmatprep.subr.mxu0 0.0
      %211 = vmatpush1.msra.mxu0 0.0
      %212 = vmatprep.subr.mxu0 0.0
      %213 = vmatpush1.msra.mxu0 0.0
      %214 = vmatprep.subr.mxu0 0.0
      %215 = vmatpush1.msra.mxu0 0.0
      %216 = vmatprep.subr.mxu0 0.0
      %217 = vmatpush1.msra.mxu0 0.0
      %218 = vmatprep.subr.mxu0 0.0
      %219 = vmatpush1.msra.mxu0 0.0
      %220 = vmatprep.mubr.f32.mxu0 0.0
      %221 = vmatmul.mubr.f32.gmra.mrb[0].mxu0 %v151
      %v222 = vpop.f32.mrb[0].mxu0
      %v223 = vadd.f32 0.0, %v222
      %v224 = vpop.f32.mrb[0].mxu0
      %225 = vmatprep.mubr.f32.mxu0 0.0
      %226 = vmatmul.mubr.f32.gmra.mrb[0].mxu0 %v154
      %v227 = vpop.f32.mrb[0].mxu0
      %v228 = vadd.f32 0.0, %v227
      %v229 = vpop.f32.mrb[0].mxu0
      %230 = vdwg.mxu0
      %v231 = vld [vmem:[#allocation2] sm:$0xff]
      %v232 = vld [vmem:[#allocation2 + $0x8] sm:$0xff]
      %v233 = vadd.f32 %v231, %v223
      %v234 = vadd.f32 %v232, %v228
      %v235 = vld [vmem:[%s4] sm:$0x1]
      %v237 = vlaneseq
      %v238 = vshrl.u32 %v237, 7
      %v239 = vsub.s32 0, %v238
      %v240 = vrot.slane %v235, %v239
      %v242 = vmul.f32 %v233, %v240
      %v243 = vmul.f32 %v234, %v240
      %v244 = vld [vmem:[%s5] sm:$0x1]
      %v246 = vlaneseq
      %v247 = vshrl.u32 %v246, 7
      %v248 = vsub.s32 0, %v247
      %v249 = vrot.slane %v244, %v248
      %v251 = vadd.f32 %v242, %v249
      %v252 = vadd.f32 %v243, %v249
      %253 = vst [vmem:[#allocation6] sm:$0xff] %v251
      %254 = vst [vmem:[#allocation6 + $0x8] sm:$0xff] %v252
    $region37: #{tpu_custom_call.1} parent=1 // pred_fallthru
      _
    // Predicated region
    $region38: #{tpu_custom_call.1} parent=1 // pred_check
      _
    $region39: #{tpu_custom_call.1} parent=1 // pred_check_branch
      %256 = sbr.rel (0) target = $region41
    $region40: #{tpu_custom_call.1} parent=1 // pred_region
      %s258 = ssub.s32 256, 256
      %259 = vsyncadd [#allocation5], %s258
      %s260 = sshll.u32 [#allocation6], 4
      %s261 = int_to_ptr.vmem [resolvable:$true] %s260
      %266 = dma.vmem_to_hbm [thread:$0]  %s261, 256, %s6, [#allocation5], 128, 128, 8
    $region41: #{tpu_custom_call.1} parent=1 // pred_fallthru
      _
    // Predicated region
    $region42: #{tpu_custom_call.1} parent=1 // pred_check
      _
    $region43: #{tpu_custom_call.1} parent=1 // pred_check_branch
      %268 = sbr.rel (0) target = $region45
    $region44: #{tpu_custom_call.1} parent=1 // pred_region
      %269 = dma.done [#allocation5], 256
    $region45: #{tpu_custom_call.1} parent=1 // pred_fallthru
      _
    %270 = vsyncpa [#allocation4], 1
    %271 = vsyncpa [#allocation5], 1

</llo_original>
